<compile_context>
chip_gen: v5e
topology: v5e:2x2
jax: 0.10.0
libtpu: 0.0.40
codegen_flags: <defaults>
</compile_context>

<pallas_src>
import jax
import jax.numpy as jnp
from jax import lax
from jax.experimental import pallas as pl
from jax.experimental.pallas import tpu as pltpu


def _round_up(v, m):
    return ((v + m - 1) // m) * m


def _pick_tq(n):
    """Largest query-tile that divides N, is a multiple of 8, and keeps the
    double-buffered (TQ, N) f32 attention tile well under the default scoped
    VMEM limit on every TPU generation (incl. v7x's 64 MiB physical VMEM)."""
    budget = 8 * 1024 * 1024                 # bytes allowed for 2 * TQ * N * 4
    cap = max(8, budget // (8 * n))
    for t in (512, 256, 128, 64, 32, 16, 8):
        if t <= cap and n % t == 0:
            return t
    return n                                 # fallback: whole row block


def _self_attn_kernel(xq_ref, xf_ref, wq_ref, bq_ref, wk_ref, bk_ref,
                      wv_ref, bv_ref, gamma_ref, out_ref, attn_ref):
    xq_f32 = xq_ref[0]                        # (TQ, Cp) f32 (kept for residual)
    xq = xq_f32.astype(jnp.bfloat16)          # bf16 operands for the MXU
    xf = xf_ref[0].astype(jnp.bfloat16)       # (N, Cp)

    # 1x1 convs == per-pixel linear projections; f32 accumulate, f32 bias add.
    q = jnp.dot(xq, wq_ref[...], preferred_element_type=jnp.float32) + bq_ref[...]   # (TQ, C8p)
    k = jnp.dot(xf, wk_ref[...], preferred_element_type=jnp.float32) + bk_ref[...]   # (N,  C8p)
    v = (jnp.dot(xf, wv_ref[...], preferred_element_type=jnp.float32)
         + bv_ref[...]).astype(jnp.bfloat16)                                         # (N,  Cp)

    # energy[i, j] = <q_i, k_j>; contract on the shared last dim directly so no
    # transposed copy of k is materialized.
    energy = lax.dot_general(
        q.astype(jnp.bfloat16), k.astype(jnp.bfloat16),
        dimension_numbers=(((1,), (1,)), ((), ())),
        preferred_element_type=jnp.float32)                                           # (TQ, N)

    # softmax over the key axis, numerically stabilized; the divide goes to the
    # EUP via approx reciprocal (otherwise-idle slot).
    e_max = jnp.max(energy, axis=-1, keepdims=True)
    e_exp = jnp.exp(energy - e_max)
    inv_den = pl.reciprocal(jnp.sum(e_exp, axis=-1, keepdims=True), approx=True)
    attn = e_exp * inv_den
    attn_ref[0] = attn.astype(attn_ref.dtype)

    # out[i, c] = sum_j attn[i, j] * v[j, c]  (== torch bmm(v, attn^T) in NCN layout)
    out = jnp.dot(attn.astype(jnp.bfloat16), v, preferred_element_type=jnp.float32)   # (TQ, Cp)

    gamma = gamma_ref[0, 0]                    # scalar read from SMEM
    out_ref[0] = (gamma * out + xq_f32).astype(out_ref.dtype)


def self_attn_forward(x_nchw, wq, bq, wk, bk, wv, bv, gamma):
    """x_nchw: (B, C, W, H). wq/wk: (C//8, C), wv: (C, C), biases (C//8,),(C//8,),(C,), gamma scalar.
    Returns (out (B,C,W,H), attention (B, N, N)) exactly like the PyTorch module."""
    B, C, W, H = x_nchw.shape
    C8 = wq.shape[0]
    N = W * H

    Cp = _round_up(C, 128)                     # lane-dense channel dim
    C8p = _round_up(C8, 128)                   # un-waste the MXU contraction
    TQ = _pick_tq(N)

    # NCHW -> (B, N, C); N flattened as w*H + h, matching torch .view(B, C, W*H).
    x_bnc = jnp.transpose(x_nchw.reshape(B, C, N), (0, 2, 1)).astype(jnp.float32)
    x_bnc = jnp.pad(x_bnc, ((0, 0), (0, 0), (0, Cp - C)))                     # zero channel pad

    # Weights transposed for x @ W^T, zero-padded, bf16 for the MXU.
    wq_t = jnp.zeros((Cp, C8p), jnp.float32).at[:C, :C8].set(wq.T).astype(jnp.bfloat16)
    wk_t = jnp.zeros((Cp, C8p), jnp.float32).at[:C, :C8].set(wk.T).astype(jnp.bfloat16)
    wv_t = jnp.zeros((Cp, Cp), jnp.float32).at[:C, :C].set(wv.T).astype(jnp.bfloat16)
    bq_r = jnp.zeros((1, C8p), jnp.float32).at[:, :C8].set(bq)
    bk_r = jnp.zeros((1, C8p), jnp.float32).at[:, :C8].set(bk)
    bv_r = jnp.zeros((1, Cp), jnp.float32).at[:, :C].set(bv)
    gamma_r = jnp.asarray(gamma, jnp.float32).reshape(1, 1)

    full2d = lambda b, i: (0, 0)
    out_bnc, attn = pl.pallas_call(
        _self_attn_kernel,
        out_shape=(
            jax.ShapeDtypeStruct((B, N, Cp), jnp.float32),
            jax.ShapeDtypeStruct((B, N, N), jnp.float32),
        ),
        grid_spec=pltpu.PrefetchScalarGridSpec(
            num_scalar_prefetch=0,
            grid=(B, N // TQ),
            in_specs=[
                pl.BlockSpec((1, TQ, Cp), lambda b, i: (b, i, 0)),   # x (query tile)
                pl.BlockSpec((1, N, Cp), lambda b, i: (b, 0, 0)),    # x (full rows for k/v)
                pl.BlockSpec((Cp, C8p), full2d),                     # Wq^T
                pl.BlockSpec((1, C8p), full2d),                      # bq
                pl.BlockSpec((Cp, C8p), full2d),                     # Wk^T
                pl.BlockSpec((1, C8p), full2d),                      # bk
                pl.BlockSpec((Cp, Cp), full2d),                      # Wv^T
                pl.BlockSpec((1, Cp), full2d),                       # bv
                pl.BlockSpec(memory_space=pltpu.MemorySpace.SMEM),   # gamma (scalar)
            ],
            out_specs=[
                pl.BlockSpec((1, TQ, Cp), lambda b, i: (b, i, 0)),
                pl.BlockSpec((1, TQ, N), lambda b, i: (b, i, 0)),
            ],
        ),
        compiler_params=pltpu.CompilerParams(
            dimension_semantics=("parallel", "parallel")),
    )(x_bnc, x_bnc, wq_t, bq_r, wk_t, bk_r, wv_t, bv_r, gamma_r)

    # (B, N, Cp) -> strip channel padding -> (B, C, W, H)
    out_nchw = jnp.transpose(out_bnc[:, :, :C], (0, 2, 1)).reshape(B, C, W, H)
    # TODO(synk): attention map is always emitted (module returns it); for
    # attention-free call sites this (B, N, N) f32 writeback could be dropped.
    return out_nchw, attn


def reference(x_nchw, wq, bq, wk, bk, wv, bv, gamma):
    """Pure-JAX f32 reference mirroring the PyTorch forward exactly."""
    B, C, W, H = x_nchw.shape
    N = W * H
    xf = x_nchw.reshape(B, C, N)                                   # (B, C, N)
    q = jnp.einsum('oc,bcn->bon', wq, xf) + bq[None, :, None]      # (B, C8, N)
    k = jnp.einsum('oc,bcn->bon', wk, xf) + bk[None, :, None]
    v = jnp.einsum('oc,bcn->bon', wv, xf) + bv[None, :, None]      # (B, C, N)
    energy = jnp.einsum('bci,bcj->bij', q, k)                      # (B, N, N)
    attn = jax.nn.softmax(energy, axis=-1)
    out = jnp.einsum('bcj,bij->bci', v, attn).reshape(B, C, W, H)
    return gamma * out + x_nchw, attn


if __name__ == "__main__":
    key = jax.random.PRNGKey(0)
    B, C, W, H = 2, 16, 8, 8          # in_dim=16 -> query/key project to 16//8 = 2 channels
    C8 = C // 8

    k_x, k_wq, k_bq, k_wk, k_bk, k_wv, k_bv = jax.random.split(key, 7)
    x = jax.random.normal(k_x, (B, C, W, H), dtype=jnp.float32)

    # Deterministic parameter init (1x1 conv weights collapsed to (out, in) matrices).
    wq = jax.random.normal(k_wq, (C8, C), dtype=jnp.float32) * 0.2
    bq = jax.random.normal(k_bq, (C8,), dtype=jnp.float32) * 0.1
    wk = jax.random.normal(k_wk, (C8, C), dtype=jnp.float32) * 0.2
    bk = jax.random.normal(k_bk, (C8,), dtype=jnp.float32) * 0.1
    wv = jax.random.normal(k_wv, (C, C), dtype=jnp.float32) * 0.2
    bv = jax.random.normal(k_bv, (C,), dtype=jnp.float32) * 0.1
    # nn.Parameter(torch.zeros(1)) -> gamma initialized to 0; use a nonzero value
    # here purely to exercise the residual-mix path in the test.
    gamma = jnp.float32(0.5)

    out, attn = jax.jit(self_attn_forward)(x, wq, bq, wk, bk, wv, bv, gamma)
    out = jax.block_until_ready(out)
    attn = jax.block_until_ready(attn)

    ref_out, ref_attn = reference(x, wq, bq, wk, bk, wv, bv, gamma)
    assert out.shape == (B, C, W, H) and attn.shape == (B, W * H, W * H)
    # Tolerances account for bf16 MXU operands (f32 accumulation) and the EUP
    # approx reciprocal in the softmax normalization.
    assert jnp.allclose(out, ref_out, atol=5e-2, rtol=5e-2)
    assert jnp.allclose(attn, ref_attn, atol=2e-2, rtol=2e-2)
    print("KERNEL_OK")
</pallas_src>

<mosaic_0001>
module attributes {stable_mosaic.version = 11 : i64} {
  func.func @_self_attn_kernel(%arg0: i32, %arg1: i32, %arg2: memref<1x64x128xf32, #tpu.memory_space<vmem>>, %arg3: memref<1x64x128xf32, #tpu.memory_space<vmem>>, %arg4: memref<128x128xbf16, #tpu.memory_space<vmem>>, %arg5: memref<1x128xf32, #tpu.memory_space<vmem>>, %arg6: memref<128x128xbf16, #tpu.memory_space<vmem>>, %arg7: memref<1x128xf32, #tpu.memory_space<vmem>>, %arg8: memref<128x128xbf16, #tpu.memory_space<vmem>>, %arg9: memref<1x128xf32, #tpu.memory_space<vmem>>, %arg10: memref<1x1xf32, #tpu.memory_space<smem>>, %arg11: memref<1x64x128xf32, #tpu.memory_space<vmem>>, %arg12: memref<1x64x64xf32, #tpu.memory_space<vmem>>) attributes {dimension_semantics = [#tpu.dimension_semantics<parallel>, #tpu.dimension_semantics<parallel>], iteration_bounds = array<i64: 2, 1>, scalar_prefetch = 0 : i64, scratch_operands = 0 : i64, tpu.core_type = #tpu.core_type<tc>, window_params = [{transform_indices = @transform_0, window_bounds = array<i64: 1, 64, 128>}, {transform_indices = @transform_1, window_bounds = array<i64: 1, 64, 128>}, {pipeline_mode = #tpu.pipeline_mode<synchronous>, transform_indices = @transform_2, window_bounds = array<i64: 128, 128>}, {pipeline_mode = #tpu.pipeline_mode<synchronous>, transform_indices = @transform_3, window_bounds = array<i64: 1, 128>}, {pipeline_mode = #tpu.pipeline_mode<synchronous>, transform_indices = @transform_4, window_bounds = array<i64: 128, 128>}, {pipeline_mode = #tpu.pipeline_mode<synchronous>, transform_indices = @transform_5, window_bounds = array<i64: 1, 128>}, {pipeline_mode = #tpu.pipeline_mode<synchronous>, transform_indices = @transform_6, window_bounds = array<i64: 128, 128>}, {pipeline_mode = #tpu.pipeline_mode<synchronous>, transform_indices = @transform_7, window_bounds = array<i64: 1, 128>}, {transform_indices = @transform_8, window_bounds = array<i64: 1, 1>}, {transform_indices = @transform_9, window_bounds = array<i64: 1, 64, 128>}, {transform_indices = @transform_10, window_bounds = array<i64: 1, 64, 64>}]} {
    %c0 = arith.constant 0 : index
    %c0_0 = arith.constant 0 : index
    %c0_1 = arith.constant 0 : index
    %0 = vector.load %arg2[%c0, %c0_0, %c0_1] : memref<1x64x128xf32, #tpu.memory_space<vmem>>, vector<1x64x128xf32>
    %1 = vector.shape_cast %0 : vector<1x64x128xf32> to vector<64x128xf32>
    %2 = arith.truncf %1 : vector<64x128xf32> to vector<64x128xbf16>
    %c0_2 = arith.constant 0 : index
    %c0_3 = arith.constant 0 : index
    %c0_4 = arith.constant 0 : index
    %3 = vector.load %arg3[%c0_2, %c0_3, %c0_4] : memref<1x64x128xf32, #tpu.memory_space<vmem>>, vector<1x64x128xf32>
    %4 = vector.shape_cast %3 : vector<1x64x128xf32> to vector<64x128xf32>
    %5 = arith.truncf %4 : vector<64x128xf32> to vector<64x128xbf16>
    %c0_5 = arith.constant 0 : index
    %c0_6 = arith.constant 0 : index
    %6 = vector.load %arg4[%c0_5, %c0_6] : memref<128x128xbf16, #tpu.memory_space<vmem>>, vector<128x128xbf16>
    %cst = arith.constant dense<0.000000e+00> : vector<64x128xf32>
    %7 = tpu.matmul %2, %6, %cst {dimension_numbers = #tpu.dot_dimension_numbers<[1], [0], [0], [1], [0, 0, 1, 1], [], []>} : vector<64x128xbf16>, vector<128x128xbf16>, vector<64x128xf32> -> vector<64x128xf32>
    %c0_7 = arith.constant 0 : index
    %c0_8 = arith.constant 0 : index
    %8 = vector.load %arg5[%c0_7, %c0_8] : memref<1x128xf32, #tpu.memory_space<vmem>>, vector<1x128xf32>
    %9 = vector.broadcast %8 : vector<1x128xf32> to vector<64x128xf32>
    %10 = arith.addf %7, %9 : vector<64x128xf32>
    %c0_9 = arith.constant 0 : index
    %c0_10 = arith.constant 0 : index
    %11 = vector.load %arg6[%c0_9, %c0_10] : memref<128x128xbf16, #tpu.memory_space<vmem>>, vector<128x128xbf16>
    %cst_11 = arith.constant dense<0.000000e+00> : vector<64x128xf32>
    %12 = tpu.matmul %5, %11, %cst_11 {dimension_numbers = #tpu.dot_dimension_numbers<[1], [0], [0], [1], [0, 0, 1, 1], [], []>} : vector<64x128xbf16>, vector<128x128xbf16>, vector<64x128xf32> -> vector<64x128xf32>
    %c0_12 = arith.constant 0 : index
    %c0_13 = arith.constant 0 : index
    %13 = vector.load %arg7[%c0_12, %c0_13] : memref<1x128xf32, #tpu.memory_space<vmem>>, vector<1x128xf32>
    %14 = vector.broadcast %13 : vector<1x128xf32> to vector<64x128xf32>
    %15 = arith.addf %12, %14 : vector<64x128xf32>
    %c0_14 = arith.constant 0 : index
    %c0_15 = arith.constant 0 : index
    %16 = vector.load %arg8[%c0_14, %c0_15] : memref<128x128xbf16, #tpu.memory_space<vmem>>, vector<128x128xbf16>
    %cst_16 = arith.constant dense<0.000000e+00> : vector<64x128xf32>
    %17 = tpu.matmul %5, %16, %cst_16 {dimension_numbers = #tpu.dot_dimension_numbers<[1], [0], [0], [1], [0, 0, 1, 1], [], []>} : vector<64x128xbf16>, vector<128x128xbf16>, vector<64x128xf32> -> vector<64x128xf32>
    %c0_17 = arith.constant 0 : index
    %c0_18 = arith.constant 0 : index
    %18 = vector.load %arg9[%c0_17, %c0_18] : memref<1x128xf32, #tpu.memory_space<vmem>>, vector<1x128xf32>
    %19 = vector.broadcast %18 : vector<1x128xf32> to vector<64x128xf32>
    %20 = arith.addf %17, %19 : vector<64x128xf32>
    %21 = arith.truncf %20 : vector<64x128xf32> to vector<64x128xbf16>
    %22 = arith.truncf %10 : vector<64x128xf32> to vector<64x128xbf16>
    %23 = arith.truncf %15 : vector<64x128xf32> to vector<64x128xbf16>
    %cst_19 = arith.constant dense<0.000000e+00> : vector<64x64xf32>
    %24 = tpu.matmul %22, %23, %cst_19 {dimension_numbers = #tpu.dot_dimension_numbers<[1], [1], [0], [0], [0, 0, 1, 0], [], []>} : vector<64x128xbf16>, vector<64x128xbf16>, vector<64x64xf32> -> vector<64x64xf32>
    %cst_20 = arith.constant dense<0xFF800000> : vector<64xf32>
    %25 = vector.multi_reduction <maximumf>, %24, %cst_20 [1] : vector<64x64xf32> to vector<64xf32>
    %26 = vector.shape_cast %25 : vector<64xf32> to vector<64x1xf32>
    %27 = vector.broadcast %26 : vector<64x1xf32> to vector<64x64xf32>
    %28 = arith.subf %24, %27 : vector<64x64xf32>
    %29 = math.exp %28 : vector<64x64xf32>
    %cst_21 = arith.constant dense<0.000000e+00> : vector<64xf32>
    %30 = vector.multi_reduction <add>, %29, %cst_21 [1] : vector<64x64xf32> to vector<64xf32>
    %31 = vector.shape_cast %30 : vector<64xf32> to vector<64x1xf32>
    %32 = tpu.reciprocal %31 {approx = true} : vector<64x1xf32> -> vector<64x1xf32>
    %33 = vector.broadcast %32 : vector<64x1xf32> to vector<64x64xf32>
    %34 = arith.mulf %29, %33 : vector<64x64xf32>
    %c0_22 = arith.constant 0 : index
    %c0_23 = arith.constant 0 : index
    %c0_24 = arith.constant 0 : index
    %35 = vector.load %arg12[%c0_22, %c0_23, %c0_24] : memref<1x64x64xf32, #tpu.memory_space<vmem>>, vector<1x64x64xf32>
    %36 = vector.shape_cast %35 : vector<1x64x64xf32> to vector<64x64xf32>
    %37 = vector.shape_cast %34 : vector<64x64xf32> to vector<1x64x64xf32>
    tpu.vector_store %arg12[%c0_22, %c0_23, %c0_24], %37 {strides = array<i32>} : memref<1x64x64xf32, #tpu.memory_space<vmem>>, vector<1x64x64xf32>,
    %38 = arith.truncf %34 : vector<64x64xf32> to vector<64x64xbf16>
    %cst_25 = arith.constant dense<0.000000e+00> : vector<64x128xf32>
    %39 = tpu.matmul %38, %21, %cst_25 {dimension_numbers = #tpu.dot_dimension_numbers<[1], [0], [0], [1], [0, 0, 1, 1], [], []>} : vector<64x64xbf16>, vector<64x128xbf16>, vector<64x128xf32> -> vector<64x128xf32>
    %c0_26 = arith.constant 0 : index
    %c0_27 = arith.constant 0 : index
    %40 = memref.load %arg10[%c0_26, %c0_27] : memref<1x1xf32, #tpu.memory_space<smem>>
    %41 = vector.broadcast %40 : f32 to vector<64x128xf32>
    %42 = arith.mulf %41, %39 : vector<64x128xf32>
    %43 = arith.addf %42, %1 : vector<64x128xf32>
    %c0_28 = arith.constant 0 : index
    %c0_29 = arith.constant 0 : index
    %c0_30 = arith.constant 0 : index
    %44 = vector.load %arg11[%c0_28, %c0_29, %c0_30] : memref<1x64x128xf32, #tpu.memory_space<vmem>>, vector<1x64x128xf32>
    %45 = vector.shape_cast %44 : vector<1x64x128xf32> to vector<64x128xf32>
    %46 = vector.shape_cast %43 : vector<64x128xf32> to vector<1x64x128xf32>
    tpu.vector_store %arg11[%c0_28, %c0_29, %c0_30], %46 {strides = array<i32>} : memref<1x64x128xf32, #tpu.memory_space<vmem>>, vector<1x64x128xf32>,
    return
  }
  func.func @transform_0(%arg0: i32, %arg1: i32) -> (i32, i32, i32) {
    %c0_i32 = arith.constant 0 : i32
    %c0_i32_0 = arith.constant 0 : i32
    return %arg0, %arg1, %c0_i32 : i32, i32, i32
  }
  func.func @transform_1(%arg0: i32, %arg1: i32) -> (i32, i32, i32) {
    %c0_i32 = arith.constant 0 : i32
    %c0_i32_0 = arith.constant 0 : i32
    %c0_i32_1 = arith.constant 0 : i32
    return %arg0, %c0_i32, %c0_i32_0 : i32, i32, i32
  }
  func.func @transform_2(%arg0: i32, %arg1: i32) -> (i32, i32) {
    %c0_i32 = arith.constant 0 : i32
    %c0_i32_0 = arith.constant 0 : i32
    %c0_i32_1 = arith.constant 0 : i32
    return %c0_i32, %c0_i32_0 : i32, i32
  }
  func.func @transform_3(%arg0: i32, %arg1: i32) -> (i32, i32) {
    %c0_i32 = arith.constant 0 : i32
    %c0_i32_0 = arith.constant 0 : i32
    %c0_i32_1 = arith.constant 0 : i32
    return %c0_i32, %c0_i32_0 : i32, i32
  }
  func.func @transform_4(%arg0: i32, %arg1: i32) -> (i32, i32) {
    %c0_i32 = arith.constant 0 : i32
    %c0_i32_0 = arith.constant 0 : i32
    %c0_i32_1 = arith.constant 0 : i32
    return %c0_i32, %c0_i32_0 : i32, i32
  }
  func.func @transform_5(%arg0: i32, %arg1: i32) -> (i32, i32) {
    %c0_i32 = arith.constant 0 : i32
    %c0_i32_0 = arith.constant 0 : i32
    %c0_i32_1 = arith.constant 0 : i32
    return %c0_i32, %c0_i32_0 : i32, i32
  }
  func.func @transform_6(%arg0: i32, %arg1: i32) -> (i32, i32) {
    %c0_i32 = arith.constant 0 : i32
    %c0_i32_0 = arith.constant 0 : i32
    %c0_i32_1 = arith.constant 0 : i32
    return %c0_i32, %c0_i32_0 : i32, i32
  }
  func.func @transform_7(%arg0: i32, %arg1: i32) -> (i32, i32) {
    %c0_i32 = arith.constant 0 : i32
    %c0_i32_0 = arith.constant 0 : i32
    %c0_i32_1 = arith.constant 0 : i32
    return %c0_i32, %c0_i32_0 : i32, i32
  }
  func.func @transform_8(%arg0: i32, %arg1: i32) -> (i32, i32) {
    %c0_i32 = arith.constant 0 : i32
    %c0_i32_0 = arith.constant 0 : i32
    %c0_i32_1 = arith.constant 0 : i32
    return %c0_i32, %c0_i32_0 : i32, i32
  }
  func.func @transform_9(%arg0: i32, %arg1: i32) -> (i32, i32, i32) {
    %c0_i32 = arith.constant 0 : i32
    %c0_i32_0 = arith.constant 0 : i32
    return %arg0, %arg1, %c0_i32 : i32, i32, i32
  }
  func.func @transform_10(%arg0: i32, %arg1: i32) -> (i32, i32, i32) {
    %c0_i32 = arith.constant 0 : i32
    %c0_i32_0 = arith.constant 0 : i32
    return %arg0, %arg1, %c0_i32 : i32, i32, i32
  }
}

</mosaic_0001>

<llo_original>
// kernel: self_attn_forward.1
$region0: #{self_attn_forward.1}
  #allocation0 [shape = 'u32[]', space=smem, size = 0x4, offset = 0x4, fixed_abs, tag = 'smem constant byte address 0x4 - core index']
  #allocation1 [shape = 'u32[72,128]{1,0:T(1,128)}', space=vmem, size = 0x9000, scoped, tag = 'internal scratch']
  #allocation2 [shape = 'f32[1,1]{1,0:T(1,128)S(6)}', space=smem, size = 0x200, scoped, tag = 'scoped memory for self_attn_forward.1']
  %s0 = inlined_call_operand.vmem [shape: f32[2,64,128], index: 0, kind: input, shape index: {}, may-alias: {0,1}]
  %s1 = inlined_call_operand.vmem [shape: f32[2,64,128], index: 1, kind: input, shape index: {}, may-alias: {0,1}]
  %s2 = inlined_call_operand.vmem [shape: bf16[128,128], index: 2, kind: input, shape index: {}]
  %s3 = inlined_call_operand.vmem [shape: f32[1,128], index: 3, kind: input, shape index: {}]
  %s4 = inlined_call_operand.vmem [shape: bf16[128,128], index: 4, kind: input, shape index: {}]
  %s5 = inlined_call_operand.vmem [shape: f32[1,128], index: 5, kind: input, shape index: {}]
  %s6 = inlined_call_operand.vmem [shape: bf16[128,128], index: 6, kind: input, shape index: {}]
  %s7 = inlined_call_operand.vmem [shape: f32[1,128], index: 7, kind: input, shape index: {}]
  %s8 = inlined_call_operand.<no memory space> [shape: f32[1,1], index: 8, kind: input, shape index: {}]
  %s9 = inlined_call_operand.vmem [shape: f32[2,64,128], index: 9, kind: output, shape index: {0}]
  %s10 = inlined_call_operand.hbm [shape: f32[2,64,64], index: 10, kind: output, shape index: {1}]
  %11 = xla_tuple %s9, %s10
  %s12 = sld [smem:[#allocation0]]
  $region77: #{self_attn_forward.1} parent=0
    _
  %s14 = ssub.s32 1, %s12
  %s15 = scalar_select 0, %s14, %s12
  %16 = sst [smem:[#allocation2]] %s8
  $region1: #{self_attn_forward.1} parent=0
    #allocation3 [shape = 'u8[65536]{0}', space=vmem, size = 0x10000, scoped, tag = 'output window, operand 1']
    #allocation4 [shape = 's32[2]{0}', space=sflag, size = 0x8, scoped, tag = 'scoped memory for self_attn_forward.1']
    %17 = vsyncpa [#allocation4], 0
    %s18 = scalar_lea.sflag [#allocation4], 1
    %19 = vsyncpa %s18, 0
    loop: start=0, step=1, limit=4
    $region2: #{self_attn_forward.1} parent=1 // loop_pre_header
      _
    $region3: #{self_attn_forward.1} parent=1 // loop_header
      %s21 = sphi 0, %s25
      %p22 = scmp.ge.s32.totalorder %s21, 4
      %s28 = sphi 0, %s40
      %s29 = sphi 0, %s36
      %s30 = sphi 0, %s28
      %s31 = sphi 0, %s29
      %s32 = sphi 0, %s30
      %s33 = sphi 0, %s31
      %s45 = sphi 0, %s47
      %s48 = sphi 0, %s45
      %s49 = sphi 0, %s48
      %s65 = sphi 0, %s49
      %s71 = sphi 0, %s73
      %s74 = sphi 0, %s71
      %s75 = sphi 0, %s74
      %s91 = sphi 0, %s75
      %s95 = sphi 0, %s95
      %s97 = sphi 0, %s95
      %s98 = sphi 0, %s97
      %s112 = sphi 0, %s98
      %s116 = sphi 0, %s116
      %s118 = sphi 0, %s116
      %s119 = sphi 0, %s118
      %s133 = sphi 0, %s119
      %s137 = sphi 0, %s137
      %s139 = sphi 0, %s137
      %s140 = sphi 0, %s139
      %s154 = sphi 0, %s140
      %s158 = sphi 0, %s158
      %s160 = sphi 0, %s158
      %s161 = sphi 0, %s160
      %s175 = sphi 0, %s161
      %s179 = sphi 0, %s179
      %s181 = sphi 0, %s179
      %s182 = sphi 0, %s181
      %s196 = sphi 0, %s182
      %s200 = sphi 0, %s200
      %s202 = sphi 0, %s200
      %s203 = sphi 0, %s202
      %s217 = sphi 0, %s203
      %s221 = sphi 0, %s221
      %s223 = sphi 0, %s221
      %s224 = sphi 0, %s223
      %s238 = sphi 0, %s224
      %s246 = sphi 0, %s248
      %s249 = sphi 0, %s246
      %s250 = sphi 0, %s249
      %s266 = sphi 0, %s250
      %s274 = sphi 0, %s276
      %s277 = sphi 0, %s274
      %s278 = sphi 0, %s277
      %s294 = sphi 0, %s278
    $region4: #{self_attn_forward.1} parent=1 // loop_header_branch
      %24 = sbr.rel (%p22) target = $region8
    $region5: #{self_attn_forward.1} parent=1 // loop_body
      %s26 = ssub.s32 %s21, 1
      %s27 = ssub.s32 %s21, 2
      %s34 = sadd.s32 1, %s29
      %p35 = scmp.ge.s32.totalorder %s34, 1
      %s36 = scalar_select %p35, 0, %s34
      %s37 = sadd.s32 1, %s28
      %s38 = scalar_select %p35, %s37, %s28
      %p39 = scmp.ge.s32.totalorder %s38, 2
      %s40 = scalar_select %p39, 0, %s38
      %s41 = ssub.s32 %s28, %s40
      %s42 = ssub.s32 %s29, %s36
      %s43 = sor.u32 %s41, %s42
      %p44 = scmp.eq.s32.totalorder %s43, 0
      %s46 = sadd.s32 %s45, 1
      %s47 = scalar_select %p44, %s45, %s46
      %p50 = pneg %p44
      %p51 = scmp.eq.s32.totalorder %s21, 1
      %p52 = por %p50, %p51
      %p53 = scmp.ne.s32.totalorder %s45, %s48
      %p54 = scmp.eq.s32.totalorder %s21, 0
      %p55 = por %p53, %p54
      %p56 = scmp.ne.s32.totalorder %s45, %s48
      %p57 = scmp.eq.s32.totalorder %s26, 1
      %p58 = por %p56, %p57
      %p59 = scmp.ne.s32.totalorder %s48, %s49
      %p60 = scmp.eq.s32.totalorder %s26, 0
      %p61 = por %p59, %p60
      %p62 = scmp.ne.s32.totalorder %s48, %s49
      %p63 = scmp.eq.s32.totalorder %s27, 1
      %p64 = por %p62, %p63
      %p66 = scmp.ne.s32.totalorder %s49, %s65
      %p67 = scmp.eq.s32.totalorder %s27, 0
      %p68 = por %p66, %p67
      %s69 = ssub.s32 %s28, %s40
      %p70 = scmp.eq.s32.totalorder %s69, 0
      %s72 = sadd.s32 %s71, 1
      %s73 = scalar_select %p70, %s71, %s72
      %p76 = pneg %p70
      %p77 = scmp.eq.s32.totalorder %s21, 1
      %p78 = por %p76, %p77
      %p79 = scmp.ne.s32.totalorder %s71, %s74
      %p80 = scmp.eq.s32.totalorder %s21, 0
      %p81 = por %p79, %p80
      %p82 = scmp.ne.s32.totalorder %s71, %s74
      %p83 = scmp.eq.s32.totalorder %s26, 1
      %p84 = por %p82, %p83
      %p85 = scmp.ne.s32.totalorder %s74, %s75
      %p86 = scmp.eq.s32.totalorder %s26, 0
      %p87 = por %p85, %p86
      %p88 = scmp.ne.s32.totalorder %s74, %s75
      %p89 = scmp.eq.s32.totalorder %s27, 1
      %p90 = por %p88, %p89
      %p92 = scmp.ne.s32.totalorder %s75, %s91
      %p93 = scmp.eq.s32.totalorder %s27, 0
      %p94 = por %p92, %p93
      %s96 = sadd.s32 %s95, 1
      %p99 = scmp.eq.s32.totalorder %s21, 1
      %p100 = scmp.ne.s32.totalorder %s95, %s97
      %p101 = scmp.eq.s32.totalorder %s21, 0
      %p102 = por %p100, %p101
      %p103 = scmp.ne.s32.totalorder %s95, %s97
      %p104 = scmp.eq.s32.totalorder %s26, 1
      %p105 = por %p103, %p104
      %p106 = scmp.ne.s32.totalorder %s97, %s98
      %p107 = scmp.eq.s32.totalorder %s26, 0
      %p108 = por %p106, %p107
      %p109 = scmp.ne.s32.totalorder %s97, %s98
      %p110 = scmp.eq.s32.totalorder %s27, 1
      %p111 = por %p109, %p110
      %p113 = scmp.ne.s32.totalorder %s98, %s112
      %p114 = scmp.eq.s32.totalorder %s27, 0
      %p115 = por %p113, %p114
      %s117 = sadd.s32 %s116, 1
      %p120 = scmp.eq.s32.totalorder %s21, 1
      %p121 = scmp.ne.s32.totalorder %s116, %s118
      %p122 = scmp.eq.s32.totalorder %s21, 0
      %p123 = por %p121, %p122
      %p124 = scmp.ne.s32.totalorder %s116, %s118
      %p125 = scmp.eq.s32.totalorder %s26, 1
      %p126 = por %p124, %p125
      %p127 = scmp.ne.s32.totalorder %s118, %s119
      %p128 = scmp.eq.s32.totalorder %s26, 0
      %p129 = por %p127, %p128
      %p130 = scmp.ne.s32.totalorder %s118, %s119
      %p131 = scmp.eq.s32.totalorder %s27, 1
      %p132 = por %p130, %p131
      %p134 = scmp.ne.s32.totalorder %s119, %s133
      %p135 = scmp.eq.s32.totalorder %s27, 0
      %p136 = por %p134, %p135
      %s138 = sadd.s32 %s137, 1
      %p141 = scmp.eq.s32.totalorder %s21, 1
      %p142 = scmp.ne.s32.totalorder %s137, %s139
      %p143 = scmp.eq.s32.totalorder %s21, 0
      %p144 = por %p142, %p143
      %p145 = scmp.ne.s32.totalorder %s137, %s139
      %p146 = scmp.eq.s32.totalorder %s26, 1
      %p147 = por %p145, %p146
      %p148 = scmp.ne.s32.totalorder %s139, %s140
      %p149 = scmp.eq.s32.totalorder %s26, 0
      %p150 = por %p148, %p149
      %p151 = scmp.ne.s32.totalorder %s139, %s140
      %p152 = scmp.eq.s32.totalorder %s27, 1
      %p153 = por %p151, %p152
      %p155 = scmp.ne.s32.totalorder %s140, %s154
      %p156 = scmp.eq.s32.totalorder %s27, 0
      %p157 = por %p155, %p156
      %s159 = sadd.s32 %s158, 1
      %p162 = scmp.eq.s32.totalorder %s21, 1
      %p163 = scmp.ne.s32.totalorder %s158, %s160
      %p164 = scmp.eq.s32.totalorder %s21, 0
      %p165 = por %p163, %p164
      %p166 = scmp.ne.s32.totalorder %s158, %s160
      %p167 = scmp.eq.s32.totalorder %s26, 1
      %p168 = por %p166, %p167
      %p169 = scmp.ne.s32.totalorder %s160, %s161
      %p170 = scmp.eq.s32.totalorder %s26, 0
      %p171 = por %p169, %p170
      %p172 = scmp.ne.s32.totalorder %s160, %s161
      %p173 = scmp.eq.s32.totalorder %s27, 1
      %p174 = por %p172, %p173
      %p176 = scmp.ne.s32.totalorder %s161, %s175
      %p177 = scmp.eq.s32.totalorder %s27, 0
      %p178 = por %p176, %p177
      %s180 = sadd.s32 %s179, 1
      %p183 = scmp.eq.s32.totalorder %s21, 1
      %p184 = scmp.ne.s32.totalorder %s179, %s181
      %p185 = scmp.eq.s32.totalorder %s21, 0
      %p186 = por %p184, %p185
      %p187 = scmp.ne.s32.totalorder %s179, %s181
      %p188 = scmp.eq.s32.totalorder %s26, 1
      %p189 = por %p187, %p188
      %p190 = scmp.ne.s32.totalorder %s181, %s182
      %p191 = scmp.eq.s32.totalorder %s26, 0
      %p192 = por %p190, %p191
      %p193 = scmp.ne.s32.totalorder %s181, %s182
      %p194 = scmp.eq.s32.totalorder %s27, 1
      %p195 = por %p193, %p194
      %p197 = scmp.ne.s32.totalorder %s182, %s196
      %p198 = scmp.eq.s32.totalorder %s27, 0
      %p199 = por %p197, %p198
      %s201 = sadd.s32 %s200, 1
      %p204 = scmp.eq.s32.totalorder %s21, 1
      %p205 = scmp.ne.s32.totalorder %s200, %s202
      %p206 = scmp.eq.s32.totalorder %s21, 0
      %p207 = por %p205, %p206
      %p208 = scmp.ne.s32.totalorder %s200, %s202
      %p209 = scmp.eq.s32.totalorder %s26, 1
      %p210 = por %p208, %p209
      %p211 = scmp.ne.s32.totalorder %s202, %s203
      %p212 = scmp.eq.s32.totalorder %s26, 0
      %p213 = por %p211, %p212
      %p214 = scmp.ne.s32.totalorder %s202, %s203
      %p215 = scmp.eq.s32.totalorder %s27, 1
      %p216 = por %p214, %p215
      %p218 = scmp.ne.s32.totalorder %s203, %s217
      %p219 = scmp.eq.s32.totalorder %s27, 0
      %p220 = por %p218, %p219
      %s222 = sadd.s32 %s221, 1
      %p225 = scmp.eq.s32.totalorder %s21, 1
      %p226 = scmp.ne.s32.totalorder %s221, %s223
      %p227 = scmp.eq.s32.totalorder %s21, 0
      %p228 = por %p226, %p227
      %p229 = scmp.ne.s32.totalorder %s221, %s223
      %p230 = scmp.eq.s32.totalorder %s26, 1
      %p231 = por %p229, %p230
      %p232 = scmp.ne.s32.totalorder %s223, %s224
      %p233 = scmp.eq.s32.totalorder %s26, 0
      %p234 = por %p232, %p233
      %p235 = scmp.ne.s32.totalorder %s223, %s224
      %p236 = scmp.eq.s32.totalorder %s27, 1
      %p237 = por %p235, %p236
      %p239 = scmp.ne.s32.totalorder %s224, %s238
      %p240 = scmp.eq.s32.totalorder %s27, 0
      %p241 = por %p239, %p240
      %s242 = ssub.s32 %s28, %s40
      %s243 = ssub.s32 %s29, %s36
      %s244 = sor.u32 %s242, %s243
      %p245 = scmp.eq.s32.totalorder %s244, 0
      %s247 = sadd.s32 %s246, 1
      %s248 = scalar_select %p245, %s246, %s247
      %p251 = pneg %p245
      %p252 = scmp.eq.s32.totalorder %s21, 1
      %p253 = por %p251, %p252
      %p254 = scmp.ne.s32.totalorder %s246, %s249
      %p255 = scmp.eq.s32.totalorder %s21, 0
      %p256 = por %p254, %p255
      %p257 = scmp.ne.s32.totalorder %s246, %s249
      %p258 = scmp.eq.s32.totalorder %s26, 1
      %p259 = por %p257, %p258
      %p260 = scmp.ne.s32.totalorder %s249, %s250
      %p261 = scmp.eq.s32.totalorder %s26, 0
      %p262 = por %p260, %p261
      %p263 = scmp.ne.s32.totalorder %s249, %s250
      %p264 = scmp.eq.s32.totalorder %s27, 1
      %p265 = por %p263, %p264
      %p267 = scmp.ne.s32.totalorder %s250, %s266
      %p268 = scmp.eq.s32.totalorder %s27, 0
      %p269 = por %p267, %p268
      %s270 = ssub.s32 %s28, %s40
      %s271 = ssub.s32 %s29, %s36
      %s272 = sor.u32 %s270, %s271
      %p273 = scmp.eq.s32.totalorder %s272, 0
      %s275 = sadd.s32 %s274, 1
      %s276 = scalar_select %p273, %s274, %s275
      %p279 = pneg %p273
      %p280 = scmp.eq.s32.totalorder %s21, 1
      %p281 = por %p279, %p280
      %p282 = scmp.ne.s32.totalorder %s274, %s277
      %p283 = scmp.eq.s32.totalorder %s21, 0
      %p284 = por %p282, %p283
      %p285 = scmp.ne.s32.totalorder %s274, %s277
      %p286 = scmp.eq.s32.totalorder %s26, 1
      %p287 = por %p285, %p286
      %p288 = scmp.ne.s32.totalorder %s277, %s278
      %p289 = scmp.eq.s32.totalorder %s26, 0
      %p290 = por %p288, %p289
      %p291 = scmp.ne.s32.totalorder %s277, %s278
      %p292 = scmp.eq.s32.totalorder %s27, 1
      %p293 = por %p291, %p292
      %p295 = scmp.ne.s32.totalorder %s278, %s294
      %p296 = scmp.eq.s32.totalorder %s27, 0
      %p297 = por %p295, %p296
      %p298 = scmp.le.s32.totalorder 1, %s21
      %p299 = scmp.lt.s32.totalorder %s21, 3
      %p300 = pnand %p298, %p299
      %p301 = pneg %p300
      // Predicated region
      $region9: #{self_attn_forward.1} parent=5 // pred_check
        _
      $region10: #{self_attn_forward.1} parent=5 // pred_check_branch
        %303 = sbr.rel (%p300) target = $region12
      $region11: #{self_attn_forward.1} parent=5 // pred_region
        %s304 = ssub.s32 %s21, 1
        // Predicated region
        $region13: #{self_attn_forward.1} parent=11 // pred_check
          %p305 = pneg %p108
        $region14: #{self_attn_forward.1} parent=11 // pred_check_branch
          %307 = sbr.rel (%p305) target = $region16
        $region15: #{self_attn_forward.1} parent=11 // pred_region
          _
        $region16: #{self_attn_forward.1} parent=11 // pred_fallthru
          _
        // Predicated region
        $region17: #{self_attn_forward.1} parent=11 // pred_check
          %p308 = pneg %p129
        $region18: #{self_attn_forward.1} parent=11 // pred_check_branch
          %310 = sbr.rel (%p308) target = $region20
        $region19: #{self_attn_forward.1} parent=11 // pred_region
          _
        $region20: #{self_attn_forward.1} parent=11 // pred_fallthru
          _
        // Predicated region
        $region21: #{self_attn_forward.1} parent=11 // pred_check
          %p311 = pneg %p150
        $region22: #{self_attn_forward.1} parent=11 // pred_check_branch
          %313 = sbr.rel (%p311) target = $region24
        $region23: #{self_attn_forward.1} parent=11 // pred_region
          _
        $region24: #{self_attn_forward.1} parent=11 // pred_fallthru
          _
        // Predicated region
        $region25: #{self_attn_forward.1} parent=11 // pred_check
          %p314 = pneg %p171
        $region26: #{self_attn_forward.1} parent=11 // pred_check_branch
          %316 = sbr.rel (%p314) target = $region28
        $region27: #{self_attn_forward.1} parent=11 // pred_region
          _
        $region28: #{self_attn_forward.1} parent=11 // pred_fallthru
          _
        // Predicated region
        $region29: #{self_attn_forward.1} parent=11 // pred_check
          %p317 = pneg %p192
        $region30: #{self_attn_forward.1} parent=11 // pred_check_branch
          %319 = sbr.rel (%p317) target = $region32
        $region31: #{self_attn_forward.1} parent=11 // pred_region
          _
        $region32: #{self_attn_forward.1} parent=11 // pred_fallthru
          _
        // Predicated region
        $region33: #{self_attn_forward.1} parent=11 // pred_check
          %p320 = pneg %p213
        $region34: #{self_attn_forward.1} parent=11 // pred_check_branch
          %322 = sbr.rel (%p320) target = $region36
        $region35: #{self_attn_forward.1} parent=11 // pred_region
          _
        $region36: #{self_attn_forward.1} parent=11 // pred_fallthru
          _
        // Predicated region
        $region37: #{self_attn_forward.1} parent=11 // pred_check
          %p323 = pneg %p234
        $region38: #{self_attn_forward.1} parent=11 // pred_check_branch
          %325 = sbr.rel (%p323) target = $region40
        $region39: #{self_attn_forward.1} parent=11 // pred_region
          _
        $region40: #{self_attn_forward.1} parent=11 // pred_fallthru
          _
      $region12: #{self_attn_forward.1} parent=5 // pred_fallthru
        _
      %p326 = scmp.lt.s32.totalorder %s21, 2
      // Predicated region
      $region41: #{self_attn_forward.1} parent=5 // pred_check
        %p327 = pneg %p326
      $region42: #{self_attn_forward.1} parent=5 // pred_check_branch
        %329 = sbr.rel (%p327) target = $region44
      $region43: #{self_attn_forward.1} parent=5 // pred_region
        // Predicated region
        $region45: #{self_attn_forward.1} parent=43 // pred_check
          %p330 = pneg %p55
        $region46: #{self_attn_forward.1} parent=43 // pred_check_branch
          %332 = sbr.rel (%p330) target = $region48
        $region47: #{self_attn_forward.1} parent=43 // pred_region
          %s333 = smul.u32 8, %s29
          %p334 = scmp.lt.s32.totalorder %s28, 1
          %s335 = scalar_select %p334, %s28, 1
          %p336 = scmp.lt.s32.totalorder %s333, 7
          %s337 = scalar_select %p336, %s333, 7
          %s338 = smul.addr %s335, 8
          %s339 = sadd.s32 %s337, %s338
          %s340 = smul.addr %s339, 8
          %s341 = scalar_lea.vmem %s0, %s340
          %s342 = smul.u32 8, %s29
        $region48: #{self_attn_forward.1} parent=43 // pred_fallthru
          _
        // Predicated region
        $region49: #{self_attn_forward.1} parent=43 // pred_check
          %p343 = pneg %p81
        $region50: #{self_attn_forward.1} parent=43 // pred_check_branch
          %345 = sbr.rel (%p343) target = $region52
        $region51: #{self_attn_forward.1} parent=43 // pred_region
          %p346 = scmp.lt.s32.totalorder %s28, 1
          %s347 = scalar_select %p346, %s28, 1
          %s348 = smul.addr %s347, 8
          %s349 = smul.addr %s348, 8
          %s350 = scalar_lea.vmem %s1, %s349
        $region52: #{self_attn_forward.1} parent=43 // pred_fallthru
          _
      $region44: #{self_attn_forward.1} parent=5 // pred_fallthru
        _
      %p351 = scmp.le.s32.totalorder 1, %s21
      %p352 = scmp.lt.s32.totalorder %s21, 3
      %p353 = pnand %p351, %p352
      %p354 = pneg %p353
      // Predicated region
      $region53: #{self_attn_forward.1} parent=5 // pred_check
        _
      $region54: #{self_attn_forward.1} parent=5 // pred_check_branch
        %356 = sbr.rel (%p353) target = $region56
      $region55: #{self_attn_forward.1} parent=5 // pred_region
        %s357 = ssub.s32 %s21, 1
        %s358 = smul.u32 8, %s31
        %p359 = scmp.lt.s32.totalorder %s30, 1
        %s360 = scalar_select %p359, %s30, 1
        %p361 = scmp.lt.s32.totalorder %s358, 7
        %s362 = scalar_select %p361, %s358, 7
        %s363 = smul.addr %s360, 8
        %s364 = sadd.s32 %s362, %s363
        %s365 = smul.addr %s364, 8
        %s366 = scalar_lea.vmem %s0, %s365
        %p367 = pneg %p61
        %p368 = pneg %p58
        %p369 = scmp.lt.s32.totalorder %s30, 1
        %s370 = scalar_select %p369, %s30, 1
        %s371 = smul.addr %s370, 8
        %s372 = smul.addr %s371, 8
        %s373 = scalar_lea.vmem %s1, %s372
        %p374 = pneg %p87
        %p375 = pneg %p84
        %p376 = pneg %p108
        %p377 = pneg %p105
        %p378 = pneg %p129
        %p379 = pneg %p126
        %p380 = pneg %p150
        %p381 = pneg %p147
        %p382 = pneg %p171
        %p383 = pneg %p168
        %p384 = pneg %p192
        %p385 = pneg %p189
        %p386 = pneg %p213
        %p387 = pneg %p210
        %p388 = pneg %p234
        %p389 = pneg %p231
        %p390 = pneg %p262
        %p391 = pneg %p259
        %s392 = smul.u32 8, %s31
        %p393 = scmp.lt.s32.totalorder %s30, 1
        %s394 = scalar_select %p393, %s30, 1
        %p395 = scmp.lt.s32.totalorder %s392, 7
        %s396 = scalar_select %p395, %s392, 7
        %s397 = smul.addr %s394, 8
        %s398 = sadd.s32 %s396, %s397
        %s399 = smul.addr %s398, 8
        %s400 = scalar_lea.vmem %s9, %s399
        %p401 = pneg %p290
        %p402 = pneg %p287
        %s403 = sand.u32 %s277, 1
        %s404 = scalar_lea.sflag [#allocation4], %s403
        %s405 = sand.u32 %s277, 1
        %s406 = smul.addr %s405, 64
        %s407 = scalar_lea.vmem [#allocation3], %s406
        %s408 = smul.u32 8, %s31
        %p409 = scmp.lt.s32.totalorder %s30, 1
        %s410 = scalar_select %p409, %s30, 1
        %p411 = scmp.lt.s32.totalorder %s408, 7
        %s412 = scalar_select %p411, %s408, 7
        %s413 = smul.addr %s410, 8
        %s414 = sadd.s32 %s412, %s413
        %s415 = smul.addr %s414, 8
        %s416 = scalar_lea.vmem %s0, %s415
        %s417 = smul.u32 8, %s31
        %p418 = scmp.lt.s32.totalorder %s30, 1
        %s419 = scalar_select %p418, %s30, 1
        %s420 = smul.addr %s419, 8
        %s421 = smul.addr %s420, 8
        %s422 = scalar_lea.vmem %s1, %s421
        %s423 = smul.u32 8, %s31
        %p424 = scmp.lt.s32.totalorder %s30, 1
        %s425 = scalar_select %p424, %s30, 1
        %p426 = scmp.lt.s32.totalorder %s423, 7
        %s427 = scalar_select %p426, %s423, 7
        %s428 = smul.addr %s425, 8
        %s429 = sadd.s32 %s427, %s428
        %s430 = smul.addr %s429, 8
        %s431 = scalar_lea.vmem %s9, %s430
        %s432 = smul.u32 8, %s31
        %s433 = smul.u32 8, %s31
        %v435 = vld [vmem:[%s416] sm:$0xff]
        %v436 = vld [vmem:[%s416 + $0x8] sm:$0xff]
        %v437 = vld [vmem:[%s416 + $0x10] sm:$0xff]
        %v438 = vld [vmem:[%s416 + $0x18] sm:$0xff]
        %v439 = vld [vmem:[%s416 + $0x20] sm:$0xff]
        %v440 = vld [vmem:[%s416 + $0x28] sm:$0xff]
        %v441 = vld [vmem:[%s416 + $0x30] sm:$0xff]
        %v442 = vld [vmem:[%s416 + $0x38] sm:$0xff]
        %v443 = vpack.c.bf16 %v436, %v435
        %v444 = vpack.c.bf16 %v438, %v437
        %v445 = vpack.c.bf16 %v440, %v439
        %v446 = vpack.c.bf16 %v442, %v441
        %v447 = vld [vmem:[%s422] sm:$0xff]
        %v448 = vld [vmem:[%s422 + $0x8] sm:$0xff]
        %v449 = vld [vmem:[%s422 + $0x10] sm:$0xff]
        %v450 = vld [vmem:[%s422 + $0x18] sm:$0xff]
        %v451 = vld [vmem:[%s422 + $0x20] sm:$0xff]
        %v452 = vld [vmem:[%s422 + $0x28] sm:$0xff]
        %v453 = vld [vmem:[%s422 + $0x30] sm:$0xff]
        %v454 = vld [vmem:[%s422 + $0x38] sm:$0xff]
        %v455 = vpack.c.bf16 %v448, %v447
        %v456 = vpack.c.bf16 %v450, %v449
        %v457 = vpack.c.bf16 %v452, %v451
        %v458 = vpack.c.bf16 %v454, %v453
        %v459 = vld [vmem:[%s2] sm:$0xf]
        %v460 = vld [vmem:[%s2 + $0x4] sm:$0xf]
        %v461 = vld [vmem:[%s2 + $0x8] sm:$0xf]
        %v462 = vld [vmem:[%s2 + $0xc] sm:$0xf]
        %v463 = vld [vmem:[%s2 + $0x10] sm:$0xf]
        %v464 = vld [vmem:[%s2 + $0x14] sm:$0xf]
        %v465 = vld [vmem:[%s2 + $0x18] sm:$0xf]
        %v466 = vld [vmem:[%s2 + $0x1c] sm:$0xf]
        %v467 = vld [vmem:[%s2 + $0x20] sm:$0xf]
        %v468 = vld [vmem:[%s2 + $0x24] sm:$0xf]
        %v469 = vld [vmem:[%s2 + $0x28] sm:$0xf]
        %v470 = vld [vmem:[%s2 + $0x2c] sm:$0xf]
        %v471 = vld [vmem:[%s2 + $0x30] sm:$0xf]
        %v472 = vld [vmem:[%s2 + $0x34] sm:$0xf]
        %v473 = vld [vmem:[%s2 + $0x38] sm:$0xf]
        %v474 = vld [vmem:[%s2 + $0x3c] sm:$0xf]
        %v475 = vld [vmem:[%s3] sm:$0x1]
        %v477 = vperm.slane %v475, 0
        %v495 = vunpack.c.l.b16 %v459
        %v496 = vunpack.c.l.b16 %v460
        %v497 = vunpack.c.l.b16 %v461
        %v498 = vunpack.c.l.b16 %v462
        %v499 = vunpack.c.l.b16 %v463
        %v500 = vunpack.c.l.b16 %v464
        %v501 = vunpack.c.l.b16 %v465
        %v502 = vunpack.c.l.b16 %v466
        %v503 = vunpack.c.l.b16 %v467
        %v504 = vunpack.c.l.b16 %v468
        %v505 = vunpack.c.l.b16 %v469
        %v506 = vunpack.c.l.b16 %v470
        %v507 = vunpack.c.l.b16 %v471
        %v508 = vunpack.c.l.b16 %v472
        %v509 = vunpack.c.l.b16 %v473
        %v510 = vunpack.c.l.b16 %v474
        %v511 = vpack.c.b16 %v496, %v495
        %v512 = vpack.c.b16 %v498, %v497
        %v513 = vpack.c.b16 %v500, %v499
        %v514 = vpack.c.b16 %v502, %v501
        %v515 = vpack.c.b16 %v504, %v503
        %v516 = vpack.c.b16 %v506, %v505
        %v517 = vpack.c.b16 %v508, %v507
        %v518 = vpack.c.b16 %v510, %v509
        %527 = vmatpush.bf16.msra.mxu0 %v518
        %528 = vmatpush.bf16.msra.mxu0 %v517
        %529 = vmatpush.bf16.msra.mxu0 %v516
        %530 = vmatpush.bf16.msra.mxu0 %v515
        %531 = vmatpush.bf16.msra.mxu0 %v514
        %532 = vmatpush.bf16.msra.mxu0 %v513
        %533 = vmatpush.bf16.msra.mxu0 %v512
        %534 = vmatpush.bf16.msra.mxu0 %v511
        %535 = vmatmul.bf16.gmra.mxu0 %v443
        %v536 = vpop.f32.mrf.mxu0
        %v537 = vadd.f32 %v477, %v536
        %v538 = vpop.f32.mrf.mxu0
        %v539 = vadd.f32 %v477, %v538
        %540 = vmatmul.bf16.gmra.mxu0 %v444
        %v541 = vpop.f32.mrf.mxu0
        %v542 = vadd.f32 %v477, %v541
        %v543 = vpop.f32.mrf.mxu0
        %v544 = vadd.f32 %v477, %v543
        %545 = vmatmul.bf16.gmra.mxu0 %v445
        %v546 = vpop.f32.mrf.mxu0
        %v547 = vadd.f32 %v477, %v546
        %v548 = vpop.f32.mrf.mxu0
        %v549 = vadd.f32 %v477, %v548
        %550 = vmatmul.bf16.gmra.mxu0 %v446
        %v551 = vpop.f32.mrf.mxu0
        %v552 = vadd.f32 %v477, %v551
        %v553 = vpop.f32.mrf.mxu0
        %v554 = vadd.f32 %v477, %v553
        %555 = vdwg.mxu0
        %v556 = vld [vmem:[%s4] sm:$0xf]
        %v557 = vld [vmem:[%s4 + $0x4] sm:$0xf]
        %v558 = vld [vmem:[%s4 + $0x8] sm:$0xf]
        %v559 = vld [vmem:[%s4 + $0xc] sm:$0xf]
        %v560 = vld [vmem:[%s4 + $0x10] sm:$0xf]
        %v561 = vld [vmem:[%s4 + $0x14] sm:$0xf]
        %v562 = vld [vmem:[%s4 + $0x18] sm:$0xf]
        %v563 = vld [vmem:[%s4 + $0x1c] sm:$0xf]
        %v564 = vld [vmem:[%s4 + $0x20] sm:$0xf]
        %v565 = vld [vmem:[%s4 + $0x24] sm:$0xf]
        %v566 = vld [vmem:[%s4 + $0x28] sm:$0xf]
        %v567 = vld [vmem:[%s4 + $0x2c] sm:$0xf]
        %v568 = vld [vmem:[%s4 + $0x30] sm:$0xf]
        %v569 = vld [vmem:[%s4 + $0x34] sm:$0xf]
        %v570 = vld [vmem:[%s4 + $0x38] sm:$0xf]
        %v571 = vld [vmem:[%s4 + $0x3c] sm:$0xf]
        %v572 = vld [vmem:[%s5] sm:$0x1]
        %v574 = vperm.slane %v572, 0
        %v592 = vunpack.c.l.b16 %v556
        %v593 = vunpack.c.l.b16 %v557
        %v594 = vunpack.c.l.b16 %v558
        %v595 = vunpack.c.l.b16 %v559
        %v596 = vunpack.c.l.b16 %v560
        %v597 = vunpack.c.l.b16 %v561
        %v598 = vunpack.c.l.b16 %v562
        %v599 = vunpack.c.l.b16 %v563
        %v600 = vunpack.c.l.b16 %v564
        %v601 = vunpack.c.l.b16 %v565
        %v602 = vunpack.c.l.b16 %v566
        %v603 = vunpack.c.l.b16 %v567
        %v604 = vunpack.c.l.b16 %v568
        %v605 = vunpack.c.l.b16 %v569
        %v606 = vunpack.c.l.b16 %v570
        %v607 = vunpack.c.l.b16 %v571
        %v608 = vpack.c.b16 %v593, %v592
        %v609 = vpack.c.b16 %v595, %v594
        %v610 = vpack.c.b16 %v597, %v596
        %v611 = vpack.c.b16 %v599, %v598
        %v612 = vpack.c.b16 %v601, %v600
        %v613 = vpack.c.b16 %v603, %v602
        %v614 = vpack.c.b16 %v605, %v604
        %v615 = vpack.c.b16 %v607, %v606
        %624 = vmatpush.bf16.msra.mxu0 %v615
        %625 = vmatpush.bf16.msra.mxu0 %v614
        %626 = vmatpush.bf16.msra.mxu0 %v613
        %627 = vmatpush.bf16.msra.mxu0 %v612
        %628 = vmatpush.bf16.msra.mxu0 %v611
        %629 = vmatpush.bf16.msra.mxu0 %v610
        %630 = vmatpush.bf16.msra.mxu0 %v609
        %631 = vmatpush.bf16.msra.mxu0 %v608
        %632 = vmatmul.bf16.gmra.mxu0 %v455
        %v633 = vpop.f32.mrf.mxu0
        %v634 = vadd.f32 %v574, %v633
        %v635 = vpop.f32.mrf.mxu0
        %v636 = vadd.f32 %v574, %v635
        %637 = vmatmul.bf16.gmra.mxu0 %v456
        %v638 = vpop.f32.mrf.mxu0
        %v639 = vadd.f32 %v574, %v638
        %v640 = vpop.f32.mrf.mxu0
        %v641 = vadd.f32 %v574, %v640
        %642 = vmatmul.bf16.gmra.mxu0 %v457
        %v643 = vpop.f32.mrf.mxu0
        %v644 = vadd.f32 %v574, %v643
        %v645 = vpop.f32.mrf.mxu0
        %v646 = vadd.f32 %v574, %v645
        %647 = vmatmul.bf16.gmra.mxu0 %v458
        %v648 = vpop.f32.mrf.mxu0
        %v649 = vadd.f32 %v574, %v648
        %v650 = vpop.f32.mrf.mxu0
        %v651 = vadd.f32 %v574, %v650
        %652 = vdwg.mxu0
        %v653 = vld [vmem:[%s6] sm:$0xf]
        %v654 = vld [vmem:[%s6 + $0x4] sm:$0xf]
        %v655 = vld [vmem:[%s6 + $0x8] sm:$0xf]
        %v656 = vld [vmem:[%s6 + $0xc] sm:$0xf]
        %v657 = vld [vmem:[%s6 + $0x10] sm:$0xf]
        %v658 = vld [vmem:[%s6 + $0x14] sm:$0xf]
        %v659 = vld [vmem:[%s6 + $0x18] sm:$0xf]
        %v660 = vld [vmem:[%s6 + $0x1c] sm:$0xf]
        %v661 = vld [vmem:[%s6 + $0x20] sm:$0xf]
        %v662 = vld [vmem:[%s6 + $0x24] sm:$0xf]
        %v663 = vld [vmem:[%s6 + $0x28] sm:$0xf]
        %v664 = vld [vmem:[%s6 + $0x2c] sm:$0xf]
        %v665 = vld [vmem:[%s6 + $0x30] sm:$0xf]
        %v666 = vld [vmem:[%s6 + $0x34] sm:$0xf]
        %v667 = vld [vmem:[%s6 + $0x38] sm:$0xf]
        %v668 = vld [vmem:[%s6 + $0x3c] sm:$0xf]
        %v669 = vld [vmem:[%s7] sm:$0x1]
        %v671 = vperm.slane %v669, 0
        %v689 = vunpack.c.l.b16 %v653
        %v690 = vunpack.c.l.b16 %v654
        %v691 = vunpack.c.l.b16 %v655
        %v692 = vunpack.c.l.b16 %v656
        %v693 = vunpack.c.l.b16 %v657
        %v694 = vunpack.c.l.b16 %v658
        %v695 = vunpack.c.l.b16 %v659
        %v696 = vunpack.c.l.b16 %v660
        %v697 = vunpack.c.l.b16 %v661
        %v698 = vunpack.c.l.b16 %v662
        %v699 = vunpack.c.l.b16 %v663
        %v700 = vunpack.c.l.b16 %v664
        %v701 = vunpack.c.l.b16 %v665
        %v702 = vunpack.c.l.b16 %v666
        %v703 = vunpack.c.l.b16 %v667
        %v704 = vunpack.c.l.b16 %v668
        %v705 = vpack.c.b16 %v690, %v689
        %v706 = vpack.c.b16 %v692, %v691
        %v707 = vpack.c.b16 %v694, %v693
        %v708 = vpack.c.b16 %v696, %v695
        %v709 = vpack.c.b16 %v698, %v697
        %v710 = vpack.c.b16 %v700, %v699
        %v711 = vpack.c.b16 %v702, %v701
        %v712 = vpack.c.b16 %v704, %v703
        %721 = vmatpush.bf16.msra.mxu0 %v712
        %722 = vmatpush.bf16.msra.mxu0 %v711
        %723 = vmatpush.bf16.msra.mxu0 %v710
        %724 = vmatpush.bf16.msra.mxu0 %v709
        %725 = vmatpush.bf16.msra.mxu0 %v708
        %726 = vmatpush.bf16.msra.mxu0 %v707
        %727 = vmatpush.bf16.msra.mxu0 %v706
        %728 = vmatpush.bf16.msra.mxu0 %v705
        %729 = vmatmul.bf16.gmra.mxu0 %v455
        %v730 = vpop.f32.mrf.mxu0
        %v731 = vadd.f32 %v671, %v730
        %v732 = vpop.f32.mrf.mxu0
        %v733 = vadd.f32 %v671, %v732
        %734 = vmatmul.bf16.gmra.mxu0 %v456
        %v735 = vpop.f32.mrf.mxu0
        %v736 = vadd.f32 %v671, %v735
        %v737 = vpop.f32.mrf.mxu0
        %v738 = vadd.f32 %v671, %v737
        %739 = vmatmul.bf16.gmra.mxu0 %v457
        %v740 = vpop.f32.mrf.mxu0
        %v741 = vadd.f32 %v671, %v740
        %v742 = vpop.f32.mrf.mxu0
        %v743 = vadd.f32 %v671, %v742
        %744 = vmatmul.bf16.gmra.mxu0 %v458
        %v745 = vpop.f32.mrf.mxu0
        %v746 = vadd.f32 %v671, %v745
        %v747 = vpop.f32.mrf.mxu0
        %v748 = vadd.f32 %v671, %v747
        %749 = vdwg.mxu0
        %v750 = vpack.c.bf16 %v733, %v731
        %v751 = vpack.c.bf16 %v738, %v736
        %v752 = vpack.c.bf16 %v743, %v741
        %v753 = vpack.c.bf16 %v748, %v746
        %v754 = vpack.c.bf16 %v539, %v537
        %v755 = vpack.c.bf16 %v544, %v542
        %v756 = vpack.c.bf16 %v549, %v547
        %v757 = vpack.c.bf16 %v554, %v552
        %v758 = vpack.c.bf16 %v636, %v634
        %v759 = vpack.c.bf16 %v641, %v639
        %v760 = vpack.c.bf16 %v646, %v644
        %v761 = vpack.c.bf16 %v651, %v649
        %762 = vmatpush.bf16.xpose.msra.mxu0 0
        %763 = vmatpush.bf16.xpose.msra.mxu0 0
        %764 = vmatpush.bf16.xpose.msra.mxu0 0
        %765 = vmatpush.bf16.xpose.msra.mxu0 0
        %766 = vmatpush.bf16.xpose.msra.mxu0 %v761
        %767 = vmatpush.bf16.xpose.msra.mxu0 %v760
        %768 = vmatpush.bf16.xpose.msra.mxu0 %v759
        %769 = vmatpush.bf16.xpose.msra.mxu0 %v758
        %770 = vmatmul.bf16.gmra.mxu0 %v754
        %v771 = vpop.f32.mrf.mxu0
        %v772 = vadd.f32 0.0, %v771
        %v773 = vpop.f32.mrf.mxu0
        %v774 = vadd.f32 0.0, %v773
        %775 = vmatmul.bf16.gmra.mxu0 %v755
        %v776 = vpop.f32.mrf.mxu0
        %v777 = vadd.f32 0.0, %v776
        %v778 = vpop.f32.mrf.mxu0
        %v779 = vadd.f32 0.0, %v778
        %780 = vmatmul.bf16.gmra.mxu0 %v756
        %v781 = vpop.f32.mrf.mxu0
        %v782 = vadd.f32 0.0, %v781
        %v783 = vpop.f32.mrf.mxu0
        %v784 = vadd.f32 0.0, %v783
        %785 = vmatmul.bf16.gmra.mxu0 %v757
        %v786 = vpop.f32.mrf.mxu0
        %v787 = vadd.f32 0.0, %v786
        %v788 = vpop.f32.mrf.mxu0
        %v789 = vadd.f32 0.0, %v788
        %790 = vdwg.mxu0
        %vm791 = vcmask 523264
        %v792 = vsel %vm791, %v772, -inf
        %793 = vmax.xlane.f32.xlu0 %v792
        %v794 = vpop.xlane.xlu0 %793
        %v795 = vsel %vm791, %v774, -inf
        %796 = vmax.xlane.f32.xlu0 %v795
        %v797 = vpop.xlane.xlu0 %796
        %v798 = vsel %vm791, %v777, -inf
        %799 = vmax.xlane.f32.xlu0 %v798
        %v800 = vpop.xlane.xlu0 %799
        %v801 = vsel %vm791, %v779, -inf
        %802 = vmax.xlane.f32.xlu0 %v801
        %v803 = vpop.xlane.xlu0 %802
        %v804 = vsel %vm791, %v782, -inf
        %805 = vmax.xlane.f32.xlu0 %v804
        %v806 = vpop.xlane.xlu0 %805
        %v807 = vsel %vm791, %v784, -inf
        %808 = vmax.xlane.f32.xlu0 %v807
        %v809 = vpop.xlane.xlu0 %808
        %v810 = vsel %vm791, %v787, -inf
        %811 = vmax.xlane.f32.xlu0 %v810
        %v812 = vpop.xlane.xlu0 %811
        %v813 = vsel %vm791, %v789, -inf
        %814 = vmax.xlane.f32.xlu0 %v813
        %v815 = vpop.xlane.xlu0 %814
        %v816 = vsub.f32 %v772, %v794
        %v817 = vsub.f32 %v774, %v797
        %v818 = vsub.f32 %v777, %v800
        %v819 = vsub.f32 %v779, %v803
        %v820 = vsub.f32 %v782, %v806
        %v821 = vsub.f32 %v784, %v809
        %v822 = vsub.f32 %v787, %v812
        %v823 = vsub.f32 %v789, %v815
        %v824 = vmul.f32 %v816, 1.442695
        %v825 = vpow.pop %v824
        %v826 = vmul.f32 %v817, 1.442695
        %v827 = vpow.pop %v826
        %v828 = vmul.f32 %v818, 1.442695
        %v829 = vpow.pop %v828
        %v830 = vmul.f32 %v819, 1.442695
        %v831 = vpow.pop %v830
        %v832 = vmul.f32 %v820, 1.442695
        %v833 = vpow.pop %v832
        %v834 = vmul.f32 %v821, 1.442695
        %v835 = vpow.pop %v834
        %v836 = vmul.f32 %v822, 1.442695
        %v837 = vpow.pop %v836
        %v838 = vmul.f32 %v823, 1.442695
        %v839 = vpow.pop %v838
        %v840 = vsel %vm791, %v825, 0.0
        %841 = vadd.xlane.f32.xlu0 %v840
        %v842 = vpop.xlane.xlu0 %841
        %v843 = vsel %vm791, %v827, 0.0
        %844 = vadd.xlane.f32.xlu0 %v843
        %v845 = vpop.xlane.xlu0 %844
        %v846 = vsel %vm791, %v829, 0.0
        %847 = vadd.xlane.f32.xlu0 %v846
        %v848 = vpop.xlane.xlu0 %847
        %v849 = vsel %vm791, %v831, 0.0
        %850 = vadd.xlane.f32.xlu0 %v849
        %v851 = vpop.xlane.xlu0 %850
        %v852 = vsel %vm791, %v833, 0.0
        %853 = vadd.xlane.f32.xlu0 %v852
        %v854 = vpop.xlane.xlu0 %853
        %v855 = vsel %vm791, %v835, 0.0
        %856 = vadd.xlane.f32.xlu0 %v855
        %v857 = vpop.xlane.xlu0 %856
        %v858 = vsel %vm791, %v837, 0.0
        %859 = vadd.xlane.f32.xlu0 %v858
        %v860 = vpop.xlane.xlu0 %859
        %v861 = vsel %vm791, %v839, 0.0
        %862 = vadd.xlane.f32.xlu0 %v861
        %v863 = vpop.xlane.xlu0 %862
        %v864 = vrcp.pop %v842
        %v865 = vrcp.pop %v845
        %v866 = vrcp.pop %v848
        %v867 = vrcp.pop %v851
        %v868 = vrcp.pop %v854
        %v869 = vrcp.pop %v857
        %v870 = vrcp.pop %v860
        %v871 = vrcp.pop %v863
        %v872 = vmul.f32 %v825, %v864
        %v873 = vmul.f32 %v827, %v865
        %v874 = vmul.f32 %v829, %v866
        %v875 = vmul.f32 %v831, %v867
        %v876 = vmul.f32 %v833, %v868
        %v877 = vmul.f32 %v835, %v869
        %v878 = vmul.f32 %v837, %v870
        %v879 = vmul.f32 %v839, %v871
        %880 = vst.msk [vmem:[%s407] sm:$0xff] %vm791, %v872
        %881 = vst.msk [vmem:[%s407 + $0x8] sm:$0xff] %vm791, %v873
        %882 = vst.msk [vmem:[%s407 + $0x10] sm:$0xff] %vm791, %v874
        %883 = vst.msk [vmem:[%s407 + $0x18] sm:$0xff] %vm791, %v875
        %884 = vst.msk [vmem:[%s407 + $0x20] sm:$0xff] %vm791, %v876
        %885 = vst.msk [vmem:[%s407 + $0x28] sm:$0xff] %vm791, %v877
        %886 = vst.msk [vmem:[%s407 + $0x30] sm:$0xff] %vm791, %v878
        %887 = vst.msk [vmem:[%s407 + $0x38] sm:$0xff] %vm791, %v879
        %v888 = vpack.c.bf16 %v873, %v872
        %v889 = vpack.c.bf16 %v875, %v874
        %v890 = vpack.c.bf16 %v877, %v876
        %v891 = vpack.c.bf16 %v879, %v878
        %v893 = vsel %vm791, %v888, 0
        %v896 = vsel %vm791, %v889, 0
        %v899 = vsel %vm791, %v890, 0
        %v902 = vsel %vm791, %v891, 0
        %904 = vmatpush.bf16.msra.mxu0 0
        %905 = vmatpush.bf16.msra.mxu0 0
        %906 = vmatpush.bf16.msra.mxu0 0
        %907 = vmatpush.bf16.msra.mxu0 0
        %908 = vmatpush.bf16.msra.mxu0 %v753
        %909 = vmatpush.bf16.msra.mxu0 %v752
        %910 = vmatpush.bf16.msra.mxu0 %v751
        %911 = vmatpush.bf16.msra.mxu0 %v750
        %912 = vmatmul.bf16.gmra.mxu0 %v893
        %v913 = vpop.f32.mrf.mxu0
        %v914 = vadd.f32 0.0, %v913
        %v915 = vpop.f32.mrf.mxu0
        %v916 = vadd.f32 0.0, %v915
        %917 = vmatmul.bf16.gmra.mxu0 %v896
        %v918 = vpop.f32.mrf.mxu0
        %v919 = vadd.f32 0.0, %v918
        %v920 = vpop.f32.mrf.mxu0
        %v921 = vadd.f32 0.0, %v920
        %922 = vmatmul.bf16.gmra.mxu0 %v899
        %v923 = vpop.f32.mrf.mxu0
        %v924 = vadd.f32 0.0, %v923
        %v925 = vpop.f32.mrf.mxu0
        %v926 = vadd.f32 0.0, %v925
        %927 = vmatmul.bf16.gmra.mxu0 %v902
        %v928 = vpop.f32.mrf.mxu0
        %v929 = vadd.f32 0.0, %v928
        %v930 = vpop.f32.mrf.mxu0
        %v931 = vadd.f32 0.0, %v930
        %932 = vdwg.mxu0
        %s933 = sld [smem:[#allocation2]]
        %v934 = vstv %s933
        %v935 = vmul.f32 %v934, %v914
        %v936 = vmul.f32 %v934, %v916
        %v937 = vmul.f32 %v934, %v919
        %v938 = vmul.f32 %v934, %v921
        %v939 = vmul.f32 %v934, %v924
        %v940 = vmul.f32 %v934, %v926
        %v941 = vmul.f32 %v934, %v929
        %v942 = vmul.f32 %v934, %v931
        %v943 = vadd.f32 %v935, %v435
        %v944 = vadd.f32 %v936, %v436
        %v945 = vadd.f32 %v937, %v437
        %v946 = vadd.f32 %v938, %v438
        %v947 = vadd.f32 %v939, %v439
        %v948 = vadd.f32 %v940, %v440
        %v949 = vadd.f32 %v941, %v441
        %v950 = vadd.f32 %v942, %v442
        %951 = vst [vmem:[%s431] sm:$0xff] %v943
        %952 = vst [vmem:[%s431 + $0x8] sm:$0xff] %v944
        %953 = vst [vmem:[%s431 + $0x10] sm:$0xff] %v945
        %954 = vst [vmem:[%s431 + $0x18] sm:$0xff] %v946
        %955 = vst [vmem:[%s431 + $0x20] sm:$0xff] %v947
        %956 = vst [vmem:[%s431 + $0x28] sm:$0xff] %v948
        %957 = vst [vmem:[%s431 + $0x30] sm:$0xff] %v949
        %958 = vst [vmem:[%s431 + $0x38] sm:$0xff] %v950
        %s959 = smul.u32 8, %s31
        %p960 = scmp.lt.s32.totalorder %s30, 1
        %s961 = scalar_select %p960, %s30, 1
        %p962 = scmp.lt.s32.totalorder %s959, 7
        %s963 = scalar_select %p962, %s959, 7
        %s964 = smul.addr %s961, 8
        %s965 = sadd.s32 %s963, %s964
        %s966 = smul.addr %s965, 8
        %s967 = scalar_lea.vmem %s9, %s966
        %s968 = sand.u32 %s277, 1
        %s969 = scalar_lea.sflag [#allocation4], %s968
        %s970 = sand.u32 %s277, 1
        %s971 = smul.addr %s970, 64
        %s972 = scalar_lea.vmem [#allocation3], %s971
        // Predicated region
        $region57: #{self_attn_forward.1} parent=55 // pred_check
          %p973 = pneg %p259
        $region58: #{self_attn_forward.1} parent=55 // pred_check_branch
          %975 = sbr.rel (%p973) target = $region60
        $region59: #{self_attn_forward.1} parent=55 // pred_region
          %s976 = smul.u32 8, %s31
        $region60: #{self_attn_forward.1} parent=55 // pred_fallthru
          _
        // Predicated region
        $region61: #{self_attn_forward.1} parent=55 // pred_check
          %p977 = pneg %p287
        $region62: #{self_attn_forward.1} parent=55 // pred_check_branch
          %979 = sbr.rel (%p977) target = $region64
        $region63: #{self_attn_forward.1} parent=55 // pred_region
          %s980 = smul.u32 8, %s31
          %982 = vsyncadd %s969, 0
          %s983 = smul.addr %s30, 8
          %s984 = sadd.s32 %s980, %s983
          %s985 = smul.addr %s984, 8
          %s986 = scalar_lea.hbm %s10, %s985
          %s987 = sshll.u32 %s972, 4
          %s988 = int_to_ptr.vmem [resolvable:$true] %s987
          %s989 = sshll.u32 %s986, 4
          %s990 = int_to_ptr.hbm [resolvable:$true] %s989
          %995 = dma.vmem_to_hbm [thread:$0]  %s988, 1024, %s990, %s969, 128, 128, 8
        $region64: #{self_attn_forward.1} parent=55 // pred_fallthru
          _
      $region56: #{self_attn_forward.1} parent=5 // pred_fallthru
        _
      %p996 = scmp.le.s32.totalorder 2, %s21
      // Predicated region
      $region65: #{self_attn_forward.1} parent=5 // pred_check
        %p997 = pneg %p996
      $region66: #{self_attn_forward.1} parent=5 // pred_check_branch
        %999 = sbr.rel (%p997) target = $region68
      $region67: #{self_attn_forward.1} parent=5 // pred_region
        %s1000 = ssub.s32 %s21, 2
        // Predicated region
        $region69: #{self_attn_forward.1} parent=67 // pred_check
          %p1001 = pneg %p265
        $region70: #{self_attn_forward.1} parent=67 // pred_check_branch
          %1003 = sbr.rel (%p1001) target = $region72
        $region71: #{self_attn_forward.1} parent=67 // pred_region
          %s1004 = smul.u32 8, %s33
          %p1005 = scmp.lt.s32.totalorder %s32, 1
          %s1006 = scalar_select %p1005, %s32, 1
          %p1007 = scmp.lt.s32.totalorder %s1004, 7
          %s1008 = scalar_select %p1007, %s1004, 7
          %s1009 = smul.addr %s1006, 8
          %s1010 = sadd.s32 %s1008, %s1009
          %s1011 = smul.addr %s1010, 8
          %s1012 = scalar_lea.vmem %s9, %s1011
        $region72: #{self_attn_forward.1} parent=67 // pred_fallthru
          _
        // Predicated region
        $region73: #{self_attn_forward.1} parent=67 // pred_check
          %p1013 = pneg %p293
        $region74: #{self_attn_forward.1} parent=67 // pred_check_branch
          %1015 = sbr.rel (%p1013) target = $region76
        $region75: #{self_attn_forward.1} parent=67 // pred_region
          %s1016 = sand.u32 %s278, 1
          %s1017 = scalar_lea.sflag [#allocation4], %s1016
          %s1018 = sand.u32 %s278, 1
          %s1019 = smul.addr %s1018, 64
          %s1020 = scalar_lea.vmem [#allocation3], %s1019
          %1022 = dma.done %s1017, 1024
        $region76: #{self_attn_forward.1} parent=67 // pred_fallthru
          _
      $region68: #{self_attn_forward.1} parent=5 // pred_fallthru
        _
    $region6: #{self_attn_forward.1} parent=1 // loop_footer
      %s25 = sadd.s32 1, %s21
    $region7: #{self_attn_forward.1} parent=1 // loop_footer_branch
      %20 = sbr.rel target = $region3
    $region8: #{self_attn_forward.1} parent=1 // loop_exit
      _
    %1023 = vsyncpa [#allocation4], 1
    %s1024 = scalar_lea.sflag [#allocation4], 1
    %1025 = vsyncpa %s1024, 1

</llo_original>
